<compile_context>
chip_gen: v5e
topology: v5e:2x2
jax: 0.10.0
libtpu: 0.0.40
codegen_flags: <defaults>
</compile_context>

<pallas_src>
import jax
import jax.numpy as jnp
from jax import lax
from jax.experimental import pallas as pl
from jax.experimental.pallas import tpu as pltpu


_FUSED_SLAB_F32_LIMIT = 3 * 1024 * 1024   # fuse when C*HW*4 bytes <= this
_TILE_BUDGET_BYTES = 3 * 1024 * 1024      # per-step x tile budget for the 2-pass path


# ------------------------------ in-kernel gate helper ------------------------------


def _gate_from_sum(sum_vec, w_ref, ypad_ref, inv_hw):
    """sigmoid(Conv1d_k(mean)) along the channel (sublane) axis.

    sum_vec  : (C, 1) float32 per-channel spatial sums
    w_ref    : (k,)   float32 SMEM conv weights
    ypad_ref : (C + 2*pad, 1) float32 VMEM scratch (zero-padded means)
    returns  : (C, 1) float32 gate
    """
    C = sum_vec.shape[0]
    k = w_ref.shape[0]
    pad = (k - 1) // 2
    ypad_ref[...] = jnp.zeros_like(ypad_ref)
    ypad_ref[pad:pad + C, :] = sum_vec * inv_hw           # means, zero edges
    conv = w_ref[0] * ypad_ref[0:C, :]
    for j in range(1, k):                                 # k is tiny & static
        conv = conv + w_ref[j] * ypad_ref[j:j + C, :]
    return jax.nn.sigmoid(conv)


# ------------------------------ fused single-pass kernel ------------------------------


def _fused_call(B, C, HW, k, dtype):
    pad = (k - 1) // 2
    inv_hw = 1.0 / float(HW)

    def kernel(w_ref, x_ref, o_ref, ypad_ref):
        x = x_ref[...]                                               # (C, HW)
        pooled = jnp.sum(x, axis=-1, keepdims=True, dtype=jnp.float32)
        gate = _gate_from_sum(pooled, w_ref, ypad_ref, inv_hw)       # (C, 1) f32
        o_ref[...] = x * gate.astype(x.dtype)

    return pl.pallas_call(
        kernel,
        out_shape=jax.ShapeDtypeStruct((B, C, HW), dtype),
        grid=(B,),
        in_specs=[
            pl.BlockSpec(memory_space=pltpu.MemorySpace.SMEM),       # conv weight (k,)
            pl.BlockSpec((None, C, HW), lambda b: (b, 0, 0)),
        ],
        out_specs=pl.BlockSpec((None, C, HW), lambda b: (b, 0, 0)),
        scratch_shapes=[pltpu.VMEM((C + 2 * pad, 1), jnp.float32)],
        compiler_params=pltpu.CompilerParams(dimension_semantics=("parallel",)),
    )


# ------------------------------ fallback two-pass kernels ------------------------------


def _pool_call(B, C, HW, thw, dtype):
    """Pass 1: two partial per-channel sums per batch element (cdiv grid + tail mask)."""
    n_hw = pl.cdiv(HW, thw)
    half = pl.cdiv(n_hw, 2)

    def kernel(x_ref, sum_ref):
        s = pl.program_id(1)
        t = pl.program_id(2)

        @pl.when(t == 0)
        def _():
            sum_ref[...] = jnp.zeros_like(sum_ref)

        # Mask out-of-range lanes (tail tile and clamped duplicate tiles).
        start = (s * half + t) * thw
        lane = lax.broadcasted_iota(jnp.int32, (C, thw), 1)
        x = x_ref[...]
        xm = jnp.where(start + lane < HW, x, jnp.zeros_like(x))
        sum_ref[...] += jnp.sum(xm, axis=-1, keepdims=True, dtype=jnp.float32)

    def x_index(b, s, t):
        # Clamp so the DMA'd block always starts inside the array; the in-kernel
        # mask (based on the *logical* tile index) zeroes duplicated tiles.
        return (b, 0, jnp.minimum(s * half + t, n_hw - 1))

    return pl.pallas_call(
        kernel,
        out_shape=jax.ShapeDtypeStruct((B, 2, C, 1), jnp.float32),
        grid=(B, 2, half),
        in_specs=[pl.BlockSpec((None, C, thw), x_index)],
        out_specs=pl.BlockSpec((None, None, C, 1), lambda b, s, t: (b, s, 0, 0)),
        compiler_params=pltpu.CompilerParams(
            dimension_semantics=("parallel", "parallel", "arbitrary")),
    )


def _scale_call(B, C, HW, thw, k, dtype):
    """Pass 2: out = x * sigmoid(conv(mean)); gate recomputed per tile (tiny, hidden
    under DMA) so both grid axes stay 'parallel' (megacore-friendly even for B=1)."""
    n_hw = pl.cdiv(HW, thw)
    pad = (k - 1) // 2
    inv_hw = 1.0 / float(HW)

    def kernel(w_ref, sum_ref, x_ref, o_ref, ypad_ref):
        pooled = sum_ref[0] + sum_ref[1]                       # combine partial sums
        gate = _gate_from_sum(pooled, w_ref, ypad_ref, inv_hw)  # (C, 1) f32
        o_ref[...] = x_ref[...] * gate.astype(x_ref.dtype)

    return pl.pallas_call(
        kernel,
        out_shape=jax.ShapeDtypeStruct((B, C, HW), dtype),
        grid=(B, n_hw),
        in_specs=[
            pl.BlockSpec(memory_space=pltpu.MemorySpace.SMEM),        # conv weight (k,)
            pl.BlockSpec((None, 2, C, 1), lambda b, t: (b, 0, 0, 0)),  # partial sums
            pl.BlockSpec((None, C, thw), lambda b, t: (b, 0, t)),
        ],
        out_specs=pl.BlockSpec((None, C, thw), lambda b, t: (b, 0, t)),
        scratch_shapes=[pltpu.VMEM((C + 2 * pad, 1), jnp.float32)],
        compiler_params=pltpu.CompilerParams(
            dimension_semantics=("parallel", "parallel")),
    )


# ------------------------------ host-side wrapper ------------------------------


def _pick_hw_tile(hw, c, itemsize, budget_bytes=_TILE_BUDGET_BYTES):
    """Lane-dense (multiple of 128) HW tile under the VMEM budget.  Tiles no longer
    need to divide HW (cdiv grid + in-kernel tail mask)."""
    if hw <= 128:
        return hw
    cap = max(1, budget_bytes // max(1, c * itemsize))
    thw = max(128, (cap // 128) * 128)
    return min(thw, (hw // 128) * 128)


def eca_forward(x, weight, *, force_two_pass=False, hw_tile=None):
    """x: (B, C, H, W); weight: Conv1d(1,1,k,bias=False) weight, any shape with k elems."""
    B, C, H, W = x.shape
    HW = H * W
    w = jnp.asarray(weight).astype(jnp.float32).reshape(-1)
    k = int(w.shape[0])
    x_flat = x.reshape(B, C, HW)

    if not force_two_pass and C * HW * 4 <= _FUSED_SLAB_F32_LIMIT:
        # Single fused pass: read x once, write out once.
        out_flat = _fused_call(B, C, HW, k, x.dtype)(w, x_flat)
    else:
        itemsize = jnp.dtype(x.dtype).itemsize
        thw = hw_tile if hw_tile is not None else _pick_hw_tile(HW, C, itemsize)
        pooled = _pool_call(B, C, HW, thw, x.dtype)(x_flat)
        out_flat = _scale_call(B, C, HW, thw, k, x.dtype)(w, pooled, x_flat)
    return out_flat.reshape(B, C, H, W)


# ------------------------------ self-test ------------------------------


def _reference(x, weight):
    """Pure-JAX reference matching eca_layer.forward."""
    k = weight.shape[0]
    pad = (k - 1) // 2
    C = x.shape[1]
    y = jnp.mean(x.astype(jnp.float32), axis=(2, 3))               # (B, C)
    yp = jnp.pad(y, ((0, 0), (pad, pad)))
    conv = sum(weight[j] * yp[:, j:j + C] for j in range(k))
    gate = jax.nn.sigmoid(conv)                                     # (B, C) f32
    return (x * gate[:, :, None, None].astype(x.dtype)).astype(x.dtype)


if __name__ == "__main__":
    key = jax.random.PRNGKey(0)
    kx, kx2, kw = jax.random.split(key, 3)

    k_size = 3
    # Deterministic init matching Conv1d(1, 1, k, bias=False) default bound.
    bound = 1.0 / (k_size ** 0.5)
    weight = jax.random.uniform(kw, (k_size,), jnp.float32, -bound, bound)

    # Case 1: fused single-pass path (slab fits in VMEM), f32.
    x = jax.random.normal(kx, (2, 16, 16, 16), dtype=jnp.float32)
    out = jax.block_until_ready(eca_forward(x, weight))
    ref = _reference(x, weight)
    assert out.shape == x.shape and out.dtype == x.dtype
    assert jnp.allclose(out, ref, atol=1e-5, rtol=1e-5), "fused path mismatch"

    # Case 2: two-pass fallback, multi-tile HW not divisible by the tile
    # (exercises accumulator init, tail mask and the clamped duplicate tile).
    x2 = jax.random.normal(kx2, (2, 16, 18, 18), dtype=jnp.float32)   # HW = 324
    out2 = jax.block_until_ready(
        eca_forward(x2, weight, force_two_pass=True, hw_tile=128))    # n_hw = 3
    ref2 = _reference(x2, weight)
    assert out2.shape == x2.shape and out2.dtype == x2.dtype
    assert jnp.allclose(out2, ref2, atol=1e-5, rtol=1e-5), "two-pass path mismatch"

    # Case 3: bf16 fused path (gate math kept in f32, product rounded once to bf16).
    x3 = x.astype(jnp.bfloat16)
    out3 = jax.block_until_ready(eca_forward(x3, weight))
    ref3 = _reference(x3, weight)
    assert out3.dtype == jnp.bfloat16
    assert jnp.allclose(out3.astype(jnp.float32), ref3.astype(jnp.float32),
                        atol=2e-2, rtol=2e-2), "bf16 path mismatch"

    print("KERNEL_OK")
</pallas_src>

<mosaic_0001>
module attributes {stable_mosaic.version = 11 : i64} {
  func.func @kernel(%arg0: i32, %arg1: memref<3xf32, #tpu.memory_space<smem>>, %arg2: memref<1x16x256xf32, #tpu.memory_space<vmem>>, %arg3: memref<1x16x256xf32, #tpu.memory_space<vmem>>, %arg4: memref<18x1xf32, #tpu.memory_space<vmem>>) attributes {dimension_semantics = [#tpu.dimension_semantics<parallel>], iteration_bounds = array<i64: 2>, scalar_prefetch = 0 : i64, scratch_operands = 1 : i64, tpu.core_type = #tpu.core_type<tc>, window_params = [{transform_indices = @transform_0, window_bounds = array<i64: 3>}, {transform_indices = @transform_1, window_bounds = array<i64: 1, 16, 256>}, {transform_indices = @transform_2, window_bounds = array<i64: 1, 16, 256>}]} {
    %c0 = arith.constant 0 : index
    %c0_0 = arith.constant 0 : index
    %c0_1 = arith.constant 0 : index
    %0 = vector.load %arg2[%c0, %c0_0, %c0_1] : memref<1x16x256xf32, #tpu.memory_space<vmem>>, vector<1x16x256xf32>
    %1 = vector.shape_cast %0 : vector<1x16x256xf32> to vector<16x256xf32>
    %cst = arith.constant dense<0.000000e+00> : vector<16xf32>
    %2 = vector.multi_reduction <add>, %1, %cst [1] : vector<16x256xf32> to vector<16xf32>
    %3 = vector.shape_cast %2 : vector<16xf32> to vector<16x1xf32>
    %cst_2 = arith.constant 0.000000e+00 : f32
    %4 = vector.broadcast %cst_2 : f32 to vector<18x1xf32>
    %c0_3 = arith.constant 0 : index
    %c0_4 = arith.constant 0 : index
    %5 = vector.load %arg4[%c0_3, %c0_4] : memref<18x1xf32, #tpu.memory_space<vmem>>, vector<18x1xf32>
    tpu.vector_store %arg4[%c0_3, %c0_4], %4 {strides = array<i32>} : memref<18x1xf32, #tpu.memory_space<vmem>>, vector<18x1xf32>,
    %cst_5 = arith.constant 3.906250e-03 : f32
    %6 = vector.broadcast %cst_5 : f32 to vector<16x1xf32>
    %7 = arith.mulf %3, %6 : vector<16x1xf32>
    %c1 = arith.constant 1 : index
    %c0_6 = arith.constant 0 : index
    %8 = vector.load %arg4[%c1, %c0_6] : memref<18x1xf32, #tpu.memory_space<vmem>>, vector<16x1xf32>
    tpu.vector_store %arg4[%c1, %c0_6], %7 {strides = array<i32>} : memref<18x1xf32, #tpu.memory_space<vmem>>, vector<16x1xf32>,
    %c0_7 = arith.constant 0 : index
    %9 = memref.load %arg1[%c0_7] : memref<3xf32, #tpu.memory_space<smem>>
    %c0_8 = arith.constant 0 : index
    %c0_9 = arith.constant 0 : index
    %10 = vector.load %arg4[%c0_8, %c0_9] : memref<18x1xf32, #tpu.memory_space<vmem>>, vector<16x1xf32>
    %11 = vector.broadcast %9 : f32 to vector<16x1xf32>
    %12 = arith.mulf %11, %10 : vector<16x1xf32>
    %c1_10 = arith.constant 1 : index
    %13 = memref.load %arg1[%c1_10] : memref<3xf32, #tpu.memory_space<smem>>
    %c1_11 = arith.constant 1 : index
    %c0_12 = arith.constant 0 : index
    %14 = vector.load %arg4[%c1_11, %c0_12] : memref<18x1xf32, #tpu.memory_space<vmem>>, vector<16x1xf32>
    %15 = vector.broadcast %13 : f32 to vector<16x1xf32>
    %16 = arith.mulf %15, %14 : vector<16x1xf32>
    %17 = arith.addf %12, %16 : vector<16x1xf32>
    %c2 = arith.constant 2 : index
    %18 = memref.load %arg1[%c2] : memref<3xf32, #tpu.memory_space<smem>>
    %c2_13 = arith.constant 2 : index
    %c0_14 = arith.constant 0 : index
    %19 = vector.load %arg4[%c2_13, %c0_14] : memref<18x1xf32, #tpu.memory_space<vmem>>, vector<16x1xf32>
    %20 = vector.broadcast %18 : f32 to vector<16x1xf32>
    %21 = arith.mulf %20, %19 : vector<16x1xf32>
    %22 = arith.addf %17, %21 : vector<16x1xf32>
    %23 = arith.negf %22 : vector<16x1xf32>
    %24 = math.exp %23 : vector<16x1xf32>
    %cst_15 = arith.constant 1.000000e+00 : f32
    %25 = vector.broadcast %cst_15 : f32 to vector<16x1xf32>
    %26 = arith.addf %25, %24 : vector<16x1xf32>
    %27 = arith.divf %25, %26 : vector<16x1xf32>
    %28 = vector.broadcast %27 : vector<16x1xf32> to vector<16x256xf32>
    %29 = arith.mulf %1, %28 : vector<16x256xf32>
    %c0_16 = arith.constant 0 : index
    %c0_17 = arith.constant 0 : index
    %c0_18 = arith.constant 0 : index
    %30 = vector.load %arg3[%c0_16, %c0_17, %c0_18] : memref<1x16x256xf32, #tpu.memory_space<vmem>>, vector<1x16x256xf32>
    %31 = vector.shape_cast %30 : vector<1x16x256xf32> to vector<16x256xf32>
    %32 = vector.shape_cast %29 : vector<16x256xf32> to vector<1x16x256xf32>
    tpu.vector_store %arg3[%c0_16, %c0_17, %c0_18], %32 {strides = array<i32>} : memref<1x16x256xf32, #tpu.memory_space<vmem>>, vector<1x16x256xf32>,
    return
  }
  func.func @transform_0(%arg0: i32) -> i32 {
    %c0_i32 = arith.constant 0 : i32
    %c0_i32_0 = arith.constant 0 : i32
    return %c0_i32 : i32
  }
  func.func @transform_1(%arg0: i32) -> (i32, i32, i32) {
    %c0_i32 = arith.constant 0 : i32
    %c0_i32_0 = arith.constant 0 : i32
    %c0_i32_1 = arith.constant 0 : i32
    return %arg0, %c0_i32, %c0_i32_0 : i32, i32, i32
  }
  func.func @transform_2(%arg0: i32) -> (i32, i32, i32) {
    %c0_i32 = arith.constant 0 : i32
    %c0_i32_0 = arith.constant 0 : i32
    %c0_i32_1 = arith.constant 0 : i32
    return %arg0, %c0_i32, %c0_i32_0 : i32, i32, i32
  }
}

</mosaic_0001>

<llo_original>
// kernel: tpu_custom_call.1
$region0: #{tpu_custom_call.1}
  #allocation0 [shape = 'u32[]', space=smem, size = 0x4, offset = 0x4, fixed_abs, tag = 'smem constant byte address 0x4 - core index']
  #allocation1 [shape = 'u32[72,128]{1,0:T(1,128)}', space=vmem, size = 0x9000, scoped, tag = 'internal scratch']
  #allocation2 [shape = 'f32[18,1]{1,0:T(8,128)}', space=vmem, size = 0x3000, scoped, tag = 'scratch operand']
  %s0 = inlined_call_operand.hbm [shape: f32[3], index: 0, kind: input, shape index: {}]
  %s1 = inlined_call_operand.hbm [shape: f32[2,16,256], index: 1, kind: input, shape index: {}]
  %s2 = inlined_call_operand.hbm [shape: f32[2,16,256], index: 2, kind: output, shape index: {}]
  %s3 = sld [smem:[#allocation0]]
  $region49: #{tpu_custom_call.1} parent=0
    _
  %s5 = ssub.s32 1, %s3
  %s6 = scalar_select 0, %s5, %s3
  $region1: #{tpu_custom_call.1} parent=0
    #allocation3 [shape = 'u8[512]{0}', space=smem, size = 0x200, scoped, tag = 'input window, operand 0, single buffered']
    #allocation4 [shape = 's32[2]{0}', space=sflag, size = 0x8, scoped, tag = 'scoped memory for tpu_custom_call.1']
    #allocation5 [shape = 's32[2]{0}', space=sflag, size = 0x8, scoped, tag = 'scoped memory for tpu_custom_call.1']
    #allocation6 [shape = 's32[2]{0}', space=sflag, size = 0x8, scoped, tag = 'scoped memory for tpu_custom_call.1']
    #allocation7 [shape = 'u8[32768]{0}', space=vmem, size = 0x8000, scoped, tag = 'input window, operand 1']
    #allocation8 [shape = 'u8[32768]{0}', space=vmem, size = 0x8000, scoped, tag = 'output window, operand 0']
    %7 = vsyncpa [#allocation6], 0
    %8 = vsyncpa [#allocation4], 0
    %s9 = scalar_lea.sflag [#allocation4], 1
    %10 = vsyncpa %s9, 0
    %11 = vsyncpa [#allocation5], 0
    %s12 = scalar_lea.sflag [#allocation5], 1
    %13 = vsyncpa %s12, 0
    loop: start=0, step=1, limit=4
    $region2: #{tpu_custom_call.1} parent=1 // loop_pre_header
      _
    $region3: #{tpu_custom_call.1} parent=1 // loop_header
      %s15 = sphi 0, %s19
      %p16 = scmp.ge.s32.totalorder %s15, 4
      %s23 = sphi 0, %s23
      %s25 = sphi 0, %s23
      %s26 = sphi 0, %s25
      %s40 = sphi 0, %s26
      %s46 = sphi 0, %s48
      %s49 = sphi 0, %s46
      %s50 = sphi 0, %s49
      %s66 = sphi 0, %s50
      %s72 = sphi 0, %s74
      %s75 = sphi 0, %s72
      %s76 = sphi 0, %s75
      %s92 = sphi 0, %s76
    $region4: #{tpu_custom_call.1} parent=1 // loop_header_branch
      %18 = sbr.rel (%p16) target = $region8
    $region5: #{tpu_custom_call.1} parent=1 // loop_body
      %s20 = ssub.s32 %s15, 1
      %s21 = ssub.s32 %s15, 2
      %s22 = sadd.s32 %s15, 1
      %s24 = sadd.s32 %s23, 1
      %p27 = scmp.eq.s32.totalorder %s15, 1
      %p28 = scmp.ne.s32.totalorder %s23, %s25
      %p29 = scmp.eq.s32.totalorder %s15, 0
      %p30 = por %p28, %p29
      %p31 = scmp.ne.s32.totalorder %s23, %s25
      %p32 = scmp.eq.s32.totalorder %s20, 1
      %p33 = por %p31, %p32
      %p34 = scmp.ne.s32.totalorder %s25, %s26
      %p35 = scmp.eq.s32.totalorder %s20, 0
      %p36 = por %p34, %p35
      %p37 = scmp.ne.s32.totalorder %s25, %s26
      %p38 = scmp.eq.s32.totalorder %s21, 1
      %p39 = por %p37, %p38
      %p41 = scmp.ne.s32.totalorder %s26, %s40
      %p42 = scmp.eq.s32.totalorder %s21, 0
      %p43 = por %p41, %p42
      %s44 = ssub.s32 %s15, %s22
      %p45 = scmp.eq.s32.totalorder %s44, 0
      %s47 = sadd.s32 %s46, 1
      %s48 = scalar_select %p45, %s46, %s47
      %p51 = pneg %p45
      %p52 = scmp.eq.s32.totalorder %s15, 1
      %p53 = por %p51, %p52
      %p54 = scmp.ne.s32.totalorder %s46, %s49
      %p55 = scmp.eq.s32.totalorder %s15, 0
      %p56 = por %p54, %p55
      %p57 = scmp.ne.s32.totalorder %s46, %s49
      %p58 = scmp.eq.s32.totalorder %s20, 1
      %p59 = por %p57, %p58
      %p60 = scmp.ne.s32.totalorder %s49, %s50
      %p61 = scmp.eq.s32.totalorder %s20, 0
      %p62 = por %p60, %p61
      %p63 = scmp.ne.s32.totalorder %s49, %s50
      %p64 = scmp.eq.s32.totalorder %s21, 1
      %p65 = por %p63, %p64
      %p67 = scmp.ne.s32.totalorder %s50, %s66
      %p68 = scmp.eq.s32.totalorder %s21, 0
      %p69 = por %p67, %p68
      %s70 = ssub.s32 %s15, %s22
      %p71 = scmp.eq.s32.totalorder %s70, 0
      %s73 = sadd.s32 %s72, 1
      %s74 = scalar_select %p71, %s72, %s73
      %p77 = pneg %p71
      %p78 = scmp.eq.s32.totalorder %s15, 1
      %p79 = por %p77, %p78
      %p80 = scmp.ne.s32.totalorder %s72, %s75
      %p81 = scmp.eq.s32.totalorder %s15, 0
      %p82 = por %p80, %p81
      %p83 = scmp.ne.s32.totalorder %s72, %s75
      %p84 = scmp.eq.s32.totalorder %s20, 1
      %p85 = por %p83, %p84
      %p86 = scmp.ne.s32.totalorder %s75, %s76
      %p87 = scmp.eq.s32.totalorder %s20, 0
      %p88 = por %p86, %p87
      %p89 = scmp.ne.s32.totalorder %s75, %s76
      %p90 = scmp.eq.s32.totalorder %s21, 1
      %p91 = por %p89, %p90
      %p93 = scmp.ne.s32.totalorder %s76, %s92
      %p94 = scmp.eq.s32.totalorder %s21, 0
      %p95 = por %p93, %p94
      %p96 = scmp.le.s32.totalorder 1, %s15
      %p97 = scmp.lt.s32.totalorder %s15, 3
      %p98 = pnand %p96, %p97
      %p99 = pneg %p98
      // Predicated region
      $region9: #{tpu_custom_call.1} parent=5 // pred_check
        _
      $region10: #{tpu_custom_call.1} parent=5 // pred_check_branch
        %101 = sbr.rel (%p98) target = $region12
      $region11: #{tpu_custom_call.1} parent=5 // pred_region
        %s102 = ssub.s32 %s15, 1
        // Predicated region
        $region13: #{tpu_custom_call.1} parent=11 // pred_check
          %p103 = pneg %p36
        $region14: #{tpu_custom_call.1} parent=11 // pred_check_branch
          %105 = sbr.rel (%p103) target = $region16
        $region15: #{tpu_custom_call.1} parent=11 // pred_region
          %107 = vsyncadd [#allocation6], 0
          %s109 = sshll.u32 %s0, 4
          %s110 = int_to_ptr.hbm [resolvable:$true] %s109
          %112 = dma.hbm_to_smem %s110, 16, [#allocation3], [#allocation6]
        $region16: #{tpu_custom_call.1} parent=11 // pred_fallthru
          _
      $region12: #{tpu_custom_call.1} parent=5 // pred_fallthru
        _
      %p113 = scmp.lt.s32.totalorder %s15, 2
      // Predicated region
      $region17: #{tpu_custom_call.1} parent=5 // pred_check
        %p114 = pneg %p113
      $region18: #{tpu_custom_call.1} parent=5 // pred_check_branch
        %116 = sbr.rel (%p114) target = $region20
      $region19: #{tpu_custom_call.1} parent=5 // pred_region
        // Predicated region
        $region21: #{tpu_custom_call.1} parent=19 // pred_check
          %p117 = pneg %p56
        $region22: #{tpu_custom_call.1} parent=19 // pred_check_branch
          %119 = sbr.rel (%p117) target = $region24
        $region23: #{tpu_custom_call.1} parent=19 // pred_region
          %s120 = sand.u32 %s46, 1
          %s121 = scalar_lea.sflag [#allocation4], %s120
          %s122 = sand.u32 %s46, 1
          %s123 = smul.addr %s122, 32
          %s124 = scalar_lea.vmem [#allocation7], %s123
          %126 = vsyncadd %s121, 0
          %s127 = smul.addr %s15, 4
          %s128 = smul.addr %s127, 8
          %s129 = scalar_lea.hbm %s1, %s128
          %s130 = sshll.u32 %s129, 4
          %s131 = int_to_ptr.hbm [resolvable:$true] %s130
          %s132 = sshll.u32 %s124, 4
          %s133 = int_to_ptr.vmem [resolvable:$true] %s132
          %138 = dma.hbm_to_vmem [thread:$0]  %s131, 512, %s133, %s121, 256, 256, 16
        $region24: #{tpu_custom_call.1} parent=19 // pred_fallthru
          _
      $region20: #{tpu_custom_call.1} parent=5 // pred_fallthru
        _
      %p139 = scmp.le.s32.totalorder 1, %s15
      %p140 = scmp.lt.s32.totalorder %s15, 3
      %p141 = pnand %p139, %p140
      %p142 = pneg %p141
      // Predicated region
      $region25: #{tpu_custom_call.1} parent=5 // pred_check
        _
      $region26: #{tpu_custom_call.1} parent=5 // pred_check_branch
        %144 = sbr.rel (%p141) target = $region28
      $region27: #{tpu_custom_call.1} parent=5 // pred_region
        %s145 = ssub.s32 %s15, 1
        // Predicated region
        $region29: #{tpu_custom_call.1} parent=27 // pred_check
          %p146 = pneg %p36
        $region30: #{tpu_custom_call.1} parent=27 // pred_check_branch
          %148 = sbr.rel (%p146) target = $region32
        $region31: #{tpu_custom_call.1} parent=27 // pred_region
          %150 = dma.done [#allocation6], 16
        $region32: #{tpu_custom_call.1} parent=27 // pred_fallthru
          _
        %s151 = sand.u32 %s49, 1
        %s152 = scalar_lea.sflag [#allocation4], %s151
        %s153 = sand.u32 %s49, 1
        %s154 = smul.addr %s153, 32
        %s155 = scalar_lea.vmem [#allocation7], %s154
        // Predicated region
        $region33: #{tpu_custom_call.1} parent=27 // pred_check
          %p156 = pneg %p62
        $region34: #{tpu_custom_call.1} parent=27 // pred_check_branch
          %158 = sbr.rel (%p156) target = $region36
        $region35: #{tpu_custom_call.1} parent=27 // pred_region
          %160 = dma.done %s152, 512
        $region36: #{tpu_custom_call.1} parent=27 // pred_fallthru
          _
        %161 = sfence
        %p162 = pneg %p36
        %p163 = pneg %p33
        %s164 = sand.u32 %s49, 1
        %s165 = scalar_lea.sflag [#allocation4], %s164
        %s166 = sand.u32 %s49, 1
        %s167 = smul.addr %s166, 32
        %s168 = scalar_lea.vmem [#allocation7], %s167
        %p169 = pneg %p62
        %p170 = pneg %p59
        %p171 = pneg %p88
        %p172 = pneg %p85
        %s173 = sand.u32 %s75, 1
        %s174 = scalar_lea.sflag [#allocation5], %s173
        %s175 = sand.u32 %s75, 1
        %s176 = smul.addr %s175, 32
        %s177 = scalar_lea.vmem [#allocation8], %s176
        %v178 = vld [vmem:[%s155] sm:$0xff]
        %v179 = vld [vmem:[%s155 + $0x8] sm:$0xff]
        %v180 = vld [vmem:[%s155 + $0x10] sm:$0xff]
        %v181 = vld [vmem:[%s155 + $0x18] sm:$0xff]
        %v182 = vadd.f32 %v178, %v179
        %183 = vadd.xlane.f32.xlu0 %v182
        %v184 = vpop.xlane.xlu0 %183
        %v185 = vadd.f32 %v180, %v181
        %186 = vadd.xlane.f32.xlu0 %v185
        %v187 = vpop.xlane.xlu0 %186
        %vm188 = vcmask 7168
        %189 = vst.msk [vmem:[#allocation2] sm:$0xff] %vm188, 0.0
        %190 = vst.msk [vmem:[#allocation2 + $0x8] sm:$0xff] %vm188, 0.0
        %vm191 = vcmask 1024
        %192 = vst.msk [vmem:[#allocation2 + $0x10] sm:$0x3] %vm191, 0.0
        %v193 = vmul.f32 %v184, 0.00390625
        %v194 = vmul.f32 %v187, 0.00390625
        %195 = vst.msk [vmem:[#allocation2 + $0x1] sm:$0xff] %vm188, %v193
        %196 = vst.msk [vmem:[#allocation2 + $0x9] sm:$0xff] %vm188, %v194
        %s197 = sld [smem:[#allocation3]]
        %v198 = vld [vmem:[#allocation2] sm:$0xff]
        %v199 = vld [vmem:[#allocation2 + $0x8] sm:$0xff]
        %v200 = vstv %s197
        %v201 = vmul.f32 %v200, %v198
        %v202 = vmul.f32 %v200, %v199
        %s203 = sld [smem:[#allocation3 + $0x1]]
        %v204 = vld [vmem:[#allocation2 + $0x1] sm:$0xff]
        %v205 = vld [vmem:[#allocation2 + $0x9] sm:$0xff]
        %v206 = vstv %s203
        %v207 = vmul.f32 %v206, %v204
        %v208 = vmul.f32 %v206, %v205
        %v209 = vadd.f32 %v201, %v207
        %v210 = vadd.f32 %v202, %v208
        %s211 = sld [smem:[#allocation3 + $0x2]]
        %v212 = vld [vmem:[#allocation2 + $0x2] sm:$0xff]
        %v213 = vld [vmem:[#allocation2 + $0xa] sm:$0xff]
        %v214 = vstv %s211
        %v215 = vmul.f32 %v214, %v212
        %v216 = vmul.f32 %v214, %v213
        %v217 = vadd.f32 %v209, %v215
        %v218 = vadd.f32 %v210, %v216
        %v219 = vxor.u32 %v217, 2147483648
        %v220 = vxor.u32 %v218, 2147483648
        %v221 = vmul.f32 %v219, 1.442695
        %v222 = vpow.pop %v221
        %v223 = vmul.f32 %v220, 1.442695
        %v224 = vpow.pop %v223
        %v225 = vadd.f32 %v222, 1.0
        %v226 = vadd.f32 %v224, 1.0
        %v227 = vrcp.pop %v225
        %v228 = vmul.f32 %v225, %v227
        %v229 = vsub.f32 1.0, %v228
        %v230 = vmul.f32 %v227, %v229
        %v231 = vadd.f32 %v227, %v230
        %vm232 = vweird.f32 %v225
        %vm233 = vweird.f32 %v227
        %vm234 = vmor %vm232, %vm233
        %v235 = vsel %vm234, %v227, %v231
        %v236 = vand.u32 2147483647, %v225
        %vm237 = vcmp.eq.f32.partialorder %v236, 8.507059e+37
        %v238 = vand.u32 %v225, 2147483648
        %v239 = vor.u32 1.1754944e-38, %v238
        %v240 = vsel %vm237, %v239, %v235
        %v241 = vmul.f32 1.0, %v240
        %v242 = vrcp.pop %v226
        %v243 = vmul.f32 %v226, %v242
        %v244 = vsub.f32 1.0, %v243
        %v245 = vmul.f32 %v242, %v244
        %v246 = vadd.f32 %v242, %v245
        %vm247 = vweird.f32 %v226
        %vm248 = vweird.f32 %v242
        %vm249 = vmor %vm247, %vm248
        %v250 = vsel %vm249, %v242, %v246
        %v251 = vand.u32 2147483647, %v226
        %vm252 = vcmp.eq.f32.partialorder %v251, 8.507059e+37
        %v253 = vand.u32 %v226, 2147483648
        %v254 = vor.u32 1.1754944e-38, %v253
        %v255 = vsel %vm252, %v254, %v250
        %v256 = vmul.f32 1.0, %v255
        %258 = vset.pattern.permute.xlu0 0
        %259 = vperm.xlu0 %258, %v241
        %v260 = vpop.permute.xlu0 %259
        %263 = vset.pattern.permute.xlu0 0
        %264 = vperm.xlu0 %263, %v256
        %v265 = vpop.permute.xlu0 %264
        %v267 = vmul.f32 %v178, %v260
        %v268 = vmul.f32 %v179, %v260
        %v269 = vmul.f32 %v180, %v265
        %v270 = vmul.f32 %v181, %v265
        %271 = vst [vmem:[%s177] sm:$0xff] %v267
        %272 = vst [vmem:[%s177 + $0x8] sm:$0xff] %v268
        %273 = vst [vmem:[%s177 + $0x10] sm:$0xff] %v269
        %274 = vst [vmem:[%s177 + $0x18] sm:$0xff] %v270
        %s275 = sand.u32 %s75, 1
        %s276 = scalar_lea.sflag [#allocation5], %s275
        %s277 = sand.u32 %s75, 1
        %s278 = smul.addr %s277, 32
        %s279 = scalar_lea.vmem [#allocation8], %s278
        // Predicated region
        $region37: #{tpu_custom_call.1} parent=27 // pred_check
          %p280 = pneg %p85
        $region38: #{tpu_custom_call.1} parent=27 // pred_check_branch
          %282 = sbr.rel (%p280) target = $region40
        $region39: #{tpu_custom_call.1} parent=27 // pred_region
          %284 = vsyncadd %s276, 0
          %s285 = smul.addr %s20, 4
          %s286 = smul.addr %s285, 8
          %s287 = scalar_lea.hbm %s2, %s286
          %s288 = sshll.u32 %s279, 4
          %s289 = int_to_ptr.vmem [resolvable:$true] %s288
          %s290 = sshll.u32 %s287, 4
          %s291 = int_to_ptr.hbm [resolvable:$true] %s290
          %296 = dma.vmem_to_hbm [thread:$0]  %s289, 512, %s291, %s276, 256, 256, 16
        $region40: #{tpu_custom_call.1} parent=27 // pred_fallthru
          _
      $region28: #{tpu_custom_call.1} parent=5 // pred_fallthru
        _
      %p297 = scmp.le.s32.totalorder 2, %s15
      // Predicated region
      $region41: #{tpu_custom_call.1} parent=5 // pred_check
        %p298 = pneg %p297
      $region42: #{tpu_custom_call.1} parent=5 // pred_check_branch
        %300 = sbr.rel (%p298) target = $region44
      $region43: #{tpu_custom_call.1} parent=5 // pred_region
        %s301 = ssub.s32 %s15, 2
        // Predicated region
        $region45: #{tpu_custom_call.1} parent=43 // pred_check
          %p302 = pneg %p91
        $region46: #{tpu_custom_call.1} parent=43 // pred_check_branch
          %304 = sbr.rel (%p302) target = $region48
        $region47: #{tpu_custom_call.1} parent=43 // pred_region
          %s305 = sand.u32 %s76, 1
          %s306 = scalar_lea.sflag [#allocation5], %s305
          %s307 = sand.u32 %s76, 1
          %s308 = smul.addr %s307, 32
          %s309 = scalar_lea.vmem [#allocation8], %s308
          %311 = dma.done %s306, 512
        $region48: #{tpu_custom_call.1} parent=43 // pred_fallthru
          _
      $region44: #{tpu_custom_call.1} parent=5 // pred_fallthru
        _
    $region6: #{tpu_custom_call.1} parent=1 // loop_footer
      %s19 = sadd.s32 1, %s15
    $region7: #{tpu_custom_call.1} parent=1 // loop_footer_branch
      %14 = sbr.rel target = $region3
    $region8: #{tpu_custom_call.1} parent=1 // loop_exit
      _
    %312 = vsyncpa [#allocation4], 1
    %s313 = scalar_lea.sflag [#allocation4], 1
    %314 = vsyncpa %s313, 1
    %315 = vsyncpa [#allocation5], 1
    %s316 = scalar_lea.sflag [#allocation5], 1
    %317 = vsyncpa %s316, 1
    %318 = vsyncpa [#allocation6], 1
    %s319 = scalar_lea.sflag [#allocation6], 1
    %320 = vsyncpa %s319, 1

</llo_original>
